<compile_context>
chip_gen: v5e
topology: v5e:2x2
jax: 0.10.0
libtpu: 0.0.40
codegen_flags: <defaults>
</compile_context>

<pallas_src>
import math
import jax
import jax.numpy as jnp
from jax.experimental import pallas as pl
from jax.experimental.pallas import tpu as pltpu

LANE = 128
GRID_SPLIT_MIN_B = 1024  # below this, a second grid step costs more than it saves on 1-TC chips


def dqn_kernel(x_ref, w1_ref, b1_ref, wh_ref, bh_ref, q_ref):
    # fc + relu: MXU matmul with f32 accumulation; bias add / relu stay f32 (VPU-safe on v5e)
    h = jnp.dot(x_ref[...], w1_ref[...], preferred_element_type=jnp.float32)   # [TB, H]
    h = jnp.maximum(h + b1_ref[...], 0.0)
    # fused dueling head: value stream + mean-centering already folded into wh/bh
    q = jnp.dot(h.astype(wh_ref.dtype), wh_ref[...],
                preferred_element_type=jnp.float32)                            # [TB, A_pad]
    # f32 bias add, then cast to the (possibly bf16) output dtype; unmasked lane-dense store
    q_ref[...] = (q + bh_ref[...]).astype(q_ref.dtype)


def _round_up(x, m):
    return (x + m - 1) // m * m


def dqn_forward(state, params, *, block_b=1024, compute_dtype=jnp.bfloat16,
                out_dtype=None, slice_output=True):
    """Q-values.

    Matmul operands are cast to `compute_dtype` (bf16 default on every chip);
    accumulation, bias adds and the relu are f32. The stored q tile is cast to
    `out_dtype` (defaults to `compute_dtype`) to halve the dominant writeback
    stream while keeping an unmasked 128-lane store.

    slice_output=True  -> returns [B, A] (semantically identical to the module).
    slice_output=False -> returns the padded [b_pad, 128] slab; index [:B, :A]
                          lazily in the consumer (rows >= B are garbage).
    """
    B, S = state.shape
    A = params["no_actions"]
    w_fc, b_fc = params["w_fc"], params["b_fc"]
    w_head, b_head = params["w_head_padded"], params["b_head_padded"]
    H = w_fc.shape[1]
    A_pad = w_head.shape[1]
    if out_dtype is None:
        out_dtype = compute_dtype

    # matmul operands in compute dtype; biases stay f32 (cheap VPU adds on all chips)
    x = state.astype(compute_dtype)
    w1 = w_fc.astype(compute_dtype)
    wh = w_head.astype(compute_dtype)

    # batch tile: multiple of the packed-dtype sublane count, capped at block_b.
    # For large B, target 2 grid steps so v7x's two TensorCores both get work.
    itemsize = jnp.dtype(compute_dtype).itemsize
    sub = {4: 8, 2: 16, 1: 32}[itemsize]
    if B >= GRID_SPLIT_MIN_B:
        tb = min(block_b, _round_up(pl.cdiv(B, 2), sub))
    else:
        tb = min(block_b, _round_up(B, sub))
    tb = max(sub, _round_up(tb, sub))
    b_pad = pl.cdiv(B, tb) * tb
    if b_pad != B:
        x = jnp.pad(x, ((0, b_pad - B), (0, 0)))

    nbytes = lambda a: a.size * a.dtype.itemsize
    out_itemsize = jnp.dtype(out_dtype).itemsize
    cost = pl.CostEstimate(
        flops=2 * b_pad * (S * H + H * A_pad),
        transcendentals=0,
        bytes_accessed=(nbytes(x) + nbytes(w1) + nbytes(b_fc)
                        + nbytes(wh) + nbytes(b_head) + b_pad * A_pad * out_itemsize),
    )

    q_padded = pl.pallas_call(
        dqn_kernel,
        out_shape=jax.ShapeDtypeStruct((b_pad, A_pad), out_dtype),
        grid=(b_pad // tb,),
        in_specs=[
            pl.BlockSpec((tb, S), lambda i: (i, 0)),        # activations: streamed over batch
            pl.BlockSpec((S, H), lambda i: (0, 0)),         # weights: VMEM-resident
            pl.BlockSpec((1, H), lambda i: (0, 0)),
            pl.BlockSpec((H, A_pad), lambda i: (0, 0)),
            pl.BlockSpec((1, A_pad), lambda i: (0, 0)),
        ],
        out_specs=pl.BlockSpec((tb, A_pad), lambda i: (i, 0)),   # lane-dense [TB, 128] store
        compiler_params=pltpu.CompilerParams(dimension_semantics=("parallel",)),
        cost_estimate=cost,
    )(x, w1, b_fc, wh, b_head)

    if not slice_output:
        return q_padded            # caller indexes [:B, :A] lazily; rows >= B are garbage
    return q_padded[:B, :A]


def _scale_noise(key, size):
    x = jax.random.normal(key, (size,), dtype=jnp.float32)
    return jnp.sign(x) * jnp.sqrt(jnp.abs(x))


def init_params(key, no_states, no_actions, hidden=128, sigma_zero=0.5):
    ks = jax.random.split(key, 8)

    # fc: nn.Linear(no_states, 128)
    bnd = 1.0 / math.sqrt(no_states)
    w_fc = jax.random.uniform(ks[0], (no_states, hidden), jnp.float32, -bnd, bnd)
    b_fc = jax.random.uniform(ks[1], (1, hidden), jnp.float32, -bnd, bnd)

    # fc_val: nn.Linear(128, 1)
    bnd = 1.0 / math.sqrt(hidden)
    w_val = jax.random.uniform(ks[2], (hidden, 1), jnp.float32, -bnd, bnd)
    b_val = jax.random.uniform(ks[3], (1, 1), jnp.float32, -bnd, bnd)

    # fc_adv: NoisyLinear(128, no_actions) — effective weights (mu + sigma * eps)
    mu_range = 1.0 / math.sqrt(hidden)
    w_mu = jax.random.uniform(ks[4], (hidden, no_actions), jnp.float32, -mu_range, mu_range)
    b_mu = jax.random.uniform(ks[5], (1, no_actions), jnp.float32, -mu_range, mu_range)
    w_sigma = jnp.full((hidden, no_actions), sigma_zero / math.sqrt(hidden), jnp.float32)
    b_sigma = jnp.full((1, no_actions), sigma_zero / math.sqrt(no_actions), jnp.float32)
    eps_in = _scale_noise(ks[6], hidden)        # [H]
    eps_out = _scale_noise(ks[7], no_actions)   # [A]
    w_eps = jnp.outer(eps_in, eps_out)          # [H, A]
    b_eps = eps_out[None, :]                    # [1, A]
    w_adv = w_mu + w_sigma * w_eps
    b_adv = b_mu + b_sigma * b_eps

    # ---- algebraic dueling-head fold (exact identity) -----------------------
    #   q = val + adv - mean_j(adv)
    #     = h @ (W_adv - colmean(W_adv) + w_val) + (b_adv - mean(b_adv) + b_val)
    w_head = (w_adv - jnp.mean(w_adv, axis=1, keepdims=True)) + w_val           # [H, A]
    b_head = (b_adv - jnp.mean(b_adv, axis=1, keepdims=True)) + b_val           # [1, A]

    # zero-pad the action axis to 128 lanes for lane-dense MXU output tiles
    a_pad = max(LANE, ((no_actions + LANE - 1) // LANE) * LANE)
    w_head_padded = jnp.pad(w_head, ((0, 0), (0, a_pad - no_actions)))
    b_head_padded = jnp.pad(b_head, ((0, 0), (0, a_pad - no_actions)))

    return {
        "no_actions": no_actions,
        "w_fc": w_fc, "b_fc": b_fc,
        # raw streams (kept for the pure-JAX reference / training code)
        "w_adv": w_adv, "b_adv": b_adv,
        "w_val": w_val, "b_val": b_val,
        # fused, lane-padded head used by the kernel
        "w_head_padded": w_head_padded, "b_head_padded": b_head_padded,
    }


def dqn_reference(state, params):
    """Un-fused pure-JAX reference matching the PyTorch forward exactly."""
    h = jnp.maximum(state @ params["w_fc"] + params["b_fc"], 0.0)
    adv = h @ params["w_adv"] + params["b_adv"]
    val = h @ params["w_val"] + params["b_val"]
    return val + (adv - adv.mean(axis=1, keepdims=True))


if __name__ == "__main__":
    no_states, no_actions, batch = 32, 8, 8
    key = jax.random.PRNGKey(0)
    kp, kx, kx2 = jax.random.split(key, 3)
    params = init_params(kp, no_states, no_actions)
    state = jax.random.normal(kx, (batch, no_states), dtype=jnp.float32)

    q_ref = dqn_reference(state, params)

    # f32 path: tight check against the un-fused reference
    q_f32 = jax.block_until_ready(
        dqn_forward(state, params, compute_dtype=jnp.float32, out_dtype=jnp.float32))
    assert q_f32.shape == (batch, no_actions)
    assert jnp.allclose(q_f32, q_ref, atol=1e-4, rtol=1e-4), "f32 mismatch vs reference"

    # default fast path (bf16 operands + bf16 output, f32 accumulation): loose check
    q_bf16 = jax.block_until_ready(dqn_forward(state, params))
    assert q_bf16.shape == (batch, no_actions)
    assert jnp.allclose(q_bf16.astype(jnp.float32), q_ref, atol=5e-2, rtol=5e-2), \
        "bf16 mismatch vs reference"

    # padded-batch path (B not a multiple of the bf16 sublane tile) to exercise
    # the batch pad + slice and the padded-slab return.
    batch2 = 40
    state2 = jax.random.normal(kx2, (batch2, no_states), dtype=jnp.float32)
    q_ref2 = dqn_reference(state2, params)
    q2 = jax.block_until_ready(dqn_forward(state2, params))
    assert q2.shape == (batch2, no_actions)
    assert jnp.allclose(q2.astype(jnp.float32), q_ref2, atol=5e-2, rtol=5e-2), \
        "padded-batch mismatch vs reference"
    q2_slab = jax.block_until_ready(dqn_forward(state2, params, slice_output=False))
    assert jnp.allclose(q2_slab[:batch2, :no_actions].astype(jnp.float32), q_ref2,
                        atol=5e-2, rtol=5e-2), "padded-slab mismatch vs reference"

    print("KERNEL_OK")
</pallas_src>

<mosaic_0001>
module attributes {stable_mosaic.version = 11 : i64} {
  func.func @dqn_kernel(%arg0: i32, %arg1: memref<8x32xf32, #tpu.memory_space<vmem>>, %arg2: memref<32x128xf32, #tpu.memory_space<vmem>>, %arg3: memref<1x128xf32, #tpu.memory_space<vmem>>, %arg4: memref<128x128xf32, #tpu.memory_space<vmem>>, %arg5: memref<1x128xf32, #tpu.memory_space<vmem>>, %arg6: memref<8x128xf32, #tpu.memory_space<vmem>>) attributes {dimension_semantics = [#tpu.dimension_semantics<parallel>], iteration_bounds = array<i64: 1>, scalar_prefetch = 0 : i64, scratch_operands = 0 : i64, tpu.core_type = #tpu.core_type<tc>, window_params = [{transform_indices = @transform_0, window_bounds = array<i64: 8, 32>}, {pipeline_mode = #tpu.pipeline_mode<synchronous>, transform_indices = @transform_1, window_bounds = array<i64: 32, 128>}, {pipeline_mode = #tpu.pipeline_mode<synchronous>, transform_indices = @transform_2, window_bounds = array<i64: 1, 128>}, {pipeline_mode = #tpu.pipeline_mode<synchronous>, transform_indices = @transform_3, window_bounds = array<i64: 128, 128>}, {pipeline_mode = #tpu.pipeline_mode<synchronous>, transform_indices = @transform_4, window_bounds = array<i64: 1, 128>}, {transform_indices = @transform_5, window_bounds = array<i64: 8, 128>}]} {
    %c0 = arith.constant 0 : index
    %c0_0 = arith.constant 0 : index
    %0 = vector.load %arg1[%c0, %c0_0] : memref<8x32xf32, #tpu.memory_space<vmem>>, vector<8x32xf32>
    %c0_1 = arith.constant 0 : index
    %c0_2 = arith.constant 0 : index
    %1 = vector.load %arg2[%c0_1, %c0_2] : memref<32x128xf32, #tpu.memory_space<vmem>>, vector<32x128xf32>
    %cst = arith.constant dense<0.000000e+00> : vector<8x128xf32>
    %2 = tpu.matmul %0, %1, %cst {dimension_numbers = #tpu.dot_dimension_numbers<[1], [0], [0], [1], [0, 0, 1, 1], [], []>} : vector<8x32xf32>, vector<32x128xf32>, vector<8x128xf32> -> vector<8x128xf32>
    %c0_3 = arith.constant 0 : index
    %c0_4 = arith.constant 0 : index
    %3 = vector.load %arg3[%c0_3, %c0_4] : memref<1x128xf32, #tpu.memory_space<vmem>>, vector<1x128xf32>
    %4 = vector.broadcast %3 : vector<1x128xf32> to vector<8x128xf32>
    %5 = arith.addf %2, %4 : vector<8x128xf32>
    %cst_5 = arith.constant 0.000000e+00 : f32
    %6 = vector.broadcast %cst_5 : f32 to vector<8x128xf32>
    %7 = arith.maximumf %5, %6 : vector<8x128xf32>
    %c0_6 = arith.constant 0 : index
    %c0_7 = arith.constant 0 : index
    %8 = vector.load %arg4[%c0_6, %c0_7] : memref<128x128xf32, #tpu.memory_space<vmem>>, vector<128x128xf32>
    %cst_8 = arith.constant dense<0.000000e+00> : vector<8x128xf32>
    %9 = tpu.matmul %7, %8, %cst_8 {dimension_numbers = #tpu.dot_dimension_numbers<[1], [0], [0], [1], [0, 0, 1, 1], [], []>} : vector<8x128xf32>, vector<128x128xf32>, vector<8x128xf32> -> vector<8x128xf32>
    %c0_9 = arith.constant 0 : index
    %c0_10 = arith.constant 0 : index
    %10 = vector.load %arg5[%c0_9, %c0_10] : memref<1x128xf32, #tpu.memory_space<vmem>>, vector<1x128xf32>
    %11 = vector.broadcast %10 : vector<1x128xf32> to vector<8x128xf32>
    %12 = arith.addf %9, %11 : vector<8x128xf32>
    %c0_11 = arith.constant 0 : index
    %c0_12 = arith.constant 0 : index
    %13 = vector.load %arg6[%c0_11, %c0_12] : memref<8x128xf32, #tpu.memory_space<vmem>>, vector<8x128xf32>
    tpu.vector_store %arg6[%c0_11, %c0_12], %12 {strides = array<i32>} : memref<8x128xf32, #tpu.memory_space<vmem>>, vector<8x128xf32>,
    return
  }
  func.func @transform_0(%arg0: i32) -> (i32, i32) {
    %c0_i32 = arith.constant 0 : i32
    %c0_i32_0 = arith.constant 0 : i32
    return %arg0, %c0_i32 : i32, i32
  }
  func.func @transform_1(%arg0: i32) -> (i32, i32) {
    %c0_i32 = arith.constant 0 : i32
    %c0_i32_0 = arith.constant 0 : i32
    %c0_i32_1 = arith.constant 0 : i32
    return %c0_i32, %c0_i32_0 : i32, i32
  }
  func.func @transform_2(%arg0: i32) -> (i32, i32) {
    %c0_i32 = arith.constant 0 : i32
    %c0_i32_0 = arith.constant 0 : i32
    %c0_i32_1 = arith.constant 0 : i32
    return %c0_i32, %c0_i32_0 : i32, i32
  }
  func.func @transform_3(%arg0: i32) -> (i32, i32) {
    %c0_i32 = arith.constant 0 : i32
    %c0_i32_0 = arith.constant 0 : i32
    %c0_i32_1 = arith.constant 0 : i32
    return %c0_i32, %c0_i32_0 : i32, i32
  }
  func.func @transform_4(%arg0: i32) -> (i32, i32) {
    %c0_i32 = arith.constant 0 : i32
    %c0_i32_0 = arith.constant 0 : i32
    %c0_i32_1 = arith.constant 0 : i32
    return %c0_i32, %c0_i32_0 : i32, i32
  }
  func.func @transform_5(%arg0: i32) -> (i32, i32) {
    %c0_i32 = arith.constant 0 : i32
    %c0_i32_0 = arith.constant 0 : i32
    return %arg0, %c0_i32 : i32, i32
  }
}

</mosaic_0001>

<llo_original>
// kernel: tpu_custom_call.1
$region0: #{tpu_custom_call.1}
  #allocation0 [shape = 'u32[]', space=smem, size = 0x4, offset = 0x4, fixed_abs, tag = 'smem constant byte address 0x4 - core index']
  #allocation1 [shape = 'u32[72,128]{1,0:T(1,128)}', space=vmem, size = 0x9000, scoped, tag = 'internal scratch']
  %s0 = inlined_call_operand.hbm [shape: f32[8,32], index: 0, kind: input, shape index: {}]
  %s1 = inlined_call_operand.hbm [shape: f32[32,128], index: 1, kind: input, shape index: {}]
  %s2 = inlined_call_operand.vmem [shape: f32[1,128], index: 2, kind: input, shape index: {}]
  %s3 = inlined_call_operand.hbm [shape: f32[128,128], index: 3, kind: input, shape index: {}]
  %s4 = inlined_call_operand.vmem [shape: f32[1,128], index: 4, kind: input, shape index: {}]
  %s5 = inlined_call_operand.hbm [shape: f32[8,128], index: 5, kind: output, shape index: {}]
  %s6 = sld [smem:[#allocation0]]
  $region42: #{tpu_custom_call.1} parent=0
    _
  %s8 = ssub.s32 1, %s6
  %s9 = scalar_select 0, %s8, %s6
  $region1: #{tpu_custom_call.1} parent=0
    #allocation2 [shape = 'u8[4096]{0}', space=vmem, size = 0x1000, scoped, tag = 'input window, operand 0, single buffered']
    #allocation3 [shape = 's32[1]{0}', space=sflag, size = 0x4, scoped, tag = 'scoped memory for tpu_custom_call.1']
    #allocation4 [shape = 's32[1]{0}', space=sflag, size = 0x4, scoped, tag = 'scoped memory for tpu_custom_call.1']
    #allocation5 [shape = 'u8[16384]{0}', space=vmem, size = 0x4000, scoped, tag = 'input window, operand 1, single buffered']
    #allocation6 [shape = 's32[1]{0}', space=sflag, size = 0x4, scoped, tag = 'scoped memory for tpu_custom_call.1']
    #allocation7 [shape = 'u8[65536]{0}', space=vmem, size = 0x10000, scoped, tag = 'input window, operand 3, single buffered']
    #allocation8 [shape = 'u8[4096]{0}', space=vmem, size = 0x1000, scoped, tag = 'output window, operand 0, single buffered']
    %10 = vsyncpa [#allocation3], 0
    %11 = vsyncpa [#allocation6], 0
    %12 = vsyncpa [#allocation4], 0
    // Predicated region
    $region2: #{tpu_custom_call.1} parent=1 // pred_check
      _
    $region3: #{tpu_custom_call.1} parent=1 // pred_check_branch
      %14 = sbr.rel (0) target = $region5
    $region4: #{tpu_custom_call.1} parent=1 // pred_region
      %16 = vsyncadd [#allocation3], 0
      %s18 = sshll.u32 %s0, 4
      %s19 = int_to_ptr.hbm [resolvable:$true] %s18
      %s20 = sshll.u32 [#allocation2], 4
      %s21 = int_to_ptr.vmem [resolvable:$true] %s20
      %23 = dma.hbm_to_vmem [thread:$0]  %s19, 128, %s21, [#allocation3]
    $region5: #{tpu_custom_call.1} parent=1 // pred_fallthru
      _
    // Predicated region
    $region6: #{tpu_custom_call.1} parent=1 // pred_check
      _
    $region7: #{tpu_custom_call.1} parent=1 // pred_check_branch
      %25 = sbr.rel (0) target = $region9
    $region8: #{tpu_custom_call.1} parent=1 // pred_region
      %27 = vsyncadd [#allocation6], 0
      %s28 = sshll.u32 %s1, 4
      %s29 = int_to_ptr.hbm [resolvable:$true] %s28
      %s30 = sshll.u32 [#allocation5], 4
      %s31 = int_to_ptr.vmem [resolvable:$true] %s30
      %36 = dma.hbm_to_vmem [thread:$0]  %s29, 512, %s31, [#allocation6], 128, 128, 8
    $region9: #{tpu_custom_call.1} parent=1 // pred_fallthru
      _
    // Predicated region
    $region10: #{tpu_custom_call.1} parent=1 // pred_check
      _
    $region11: #{tpu_custom_call.1} parent=1 // pred_check_branch
      %38 = sbr.rel (0) target = $region13
    $region12: #{tpu_custom_call.1} parent=1 // pred_region
      _
    $region13: #{tpu_custom_call.1} parent=1 // pred_fallthru
      _
    // Predicated region
    $region14: #{tpu_custom_call.1} parent=1 // pred_check
      _
    $region15: #{tpu_custom_call.1} parent=1 // pred_check_branch
      %40 = sbr.rel (0) target = $region17
    $region16: #{tpu_custom_call.1} parent=1 // pred_region
      %42 = vsyncadd [#allocation6], 0
      %s43 = sshll.u32 %s3, 4
      %s44 = int_to_ptr.hbm [resolvable:$true] %s43
      %s45 = sshll.u32 [#allocation7], 4
      %s46 = int_to_ptr.vmem [resolvable:$true] %s45
      %51 = dma.hbm_to_vmem [thread:$0]  %s44, 2048, %s46, [#allocation6], 128, 128, 8
    $region17: #{tpu_custom_call.1} parent=1 // pred_fallthru
      _
    // Predicated region
    $region18: #{tpu_custom_call.1} parent=1 // pred_check
      _
    $region19: #{tpu_custom_call.1} parent=1 // pred_check_branch
      %53 = sbr.rel (0) target = $region21
    $region20: #{tpu_custom_call.1} parent=1 // pred_region
      _
    $region21: #{tpu_custom_call.1} parent=1 // pred_fallthru
      _
    // Predicated region
    $region22: #{tpu_custom_call.1} parent=1 // pred_check
      _
    $region23: #{tpu_custom_call.1} parent=1 // pred_check_branch
      %55 = sbr.rel (0) target = $region25
    $region24: #{tpu_custom_call.1} parent=1 // pred_region
      %57 = dma.done [#allocation3], 128
    $region25: #{tpu_custom_call.1} parent=1 // pred_fallthru
      _
    // Predicated region
    $region26: #{tpu_custom_call.1} parent=1 // pred_check
      _
    $region27: #{tpu_custom_call.1} parent=1 // pred_check_branch
      %59 = sbr.rel (0) target = $region29
    $region28: #{tpu_custom_call.1} parent=1 // pred_region
      %61 = dma.done [#allocation6], 512
    $region29: #{tpu_custom_call.1} parent=1 // pred_fallthru
      _
    // Predicated region
    $region30: #{tpu_custom_call.1} parent=1 // pred_check
      _
    $region31: #{tpu_custom_call.1} parent=1 // pred_check_branch
      %63 = sbr.rel (0) target = $region33
    $region32: #{tpu_custom_call.1} parent=1 // pred_region
      %65 = dma.done [#allocation6], 2048
    $region33: #{tpu_custom_call.1} parent=1 // pred_fallthru
      _
    %v66 = vld [vmem:[#allocation2] sm:$0xff]
    %v67 = vld [vmem:[#allocation5] sm:$0xff]
    %v68 = vld [vmem:[#allocation5 + $0x8] sm:$0xff]
    %v69 = vld [vmem:[#allocation5 + $0x10] sm:$0xff]
    %v70 = vld [vmem:[#allocation5 + $0x18] sm:$0xff]
    %v71 = vld [vmem:[%s2] sm:$0x1]
    %v73 = vperm.slane %v71, 0
    %vm75 = vcmask 261120
    %v77 = vsel %vm75, %v66, 0
    %79 = vmatpush.msra.mxu0 0.0
    %80 = vmatpush.msra.mxu0 0.0
    %81 = vmatpush.msra.mxu0 0.0
    %82 = vmatpush.msra.mxu0 0.0
    %83 = vmatpush.msra.mxu0 0.0
    %84 = vmatpush.msra.mxu0 0.0
    %85 = vmatpush.msra.mxu0 0.0
    %86 = vmatpush.msra.mxu0 0.0
    %87 = vmatpush.msra.mxu0 0.0
    %88 = vmatpush.msra.mxu0 0.0
    %89 = vmatpush.msra.mxu0 0.0
    %90 = vmatpush.msra.mxu0 0.0
    %91 = vmatpush.msra.mxu0 %v70
    %92 = vmatpush.msra.mxu0 %v69
    %93 = vmatpush.msra.mxu0 %v68
    %94 = vmatpush.msra.mxu0 %v67
    %95 = vmatmul.f32.gmra.mxu0 %v77
    %v96 = vpop.f32.mrf.mxu0
    %v97 = vadd.f32 %v73, %v96
    %98 = vdwg.mxu0
    %v99 = vmax.f32 %v97, 0.0
    %v100 = vld [vmem:[#allocation7] sm:$0xff]
    %v101 = vld [vmem:[#allocation7 + $0x8] sm:$0xff]
    %v102 = vld [vmem:[#allocation7 + $0x10] sm:$0xff]
    %v103 = vld [vmem:[#allocation7 + $0x18] sm:$0xff]
    %v104 = vld [vmem:[#allocation7 + $0x20] sm:$0xff]
    %v105 = vld [vmem:[#allocation7 + $0x28] sm:$0xff]
    %v106 = vld [vmem:[#allocation7 + $0x30] sm:$0xff]
    %v107 = vld [vmem:[#allocation7 + $0x38] sm:$0xff]
    %v108 = vld [vmem:[#allocation7 + $0x40] sm:$0xff]
    %v109 = vld [vmem:[#allocation7 + $0x48] sm:$0xff]
    %v110 = vld [vmem:[#allocation7 + $0x50] sm:$0xff]
    %v111 = vld [vmem:[#allocation7 + $0x58] sm:$0xff]
    %v112 = vld [vmem:[#allocation7 + $0x60] sm:$0xff]
    %v113 = vld [vmem:[#allocation7 + $0x68] sm:$0xff]
    %v114 = vld [vmem:[#allocation7 + $0x70] sm:$0xff]
    %v115 = vld [vmem:[#allocation7 + $0x78] sm:$0xff]
    %v116 = vld [vmem:[%s4] sm:$0x1]
    %v118 = vperm.slane %v116, 0
    %120 = vmatpush.msra.mxu0 %v115
    %121 = vmatpush.msra.mxu0 %v114
    %122 = vmatpush.msra.mxu0 %v113
    %123 = vmatpush.msra.mxu0 %v112
    %124 = vmatpush.msra.mxu0 %v111
    %125 = vmatpush.msra.mxu0 %v110
    %126 = vmatpush.msra.mxu0 %v109
    %127 = vmatpush.msra.mxu0 %v108
    %128 = vmatpush.msra.mxu0 %v107
    %129 = vmatpush.msra.mxu0 %v106
    %130 = vmatpush.msra.mxu0 %v105
    %131 = vmatpush.msra.mxu0 %v104
    %132 = vmatpush.msra.mxu0 %v103
    %133 = vmatpush.msra.mxu0 %v102
    %134 = vmatpush.msra.mxu0 %v101
    %135 = vmatpush.msra.mxu0 %v100
    %136 = vmatmul.f32.gmra.mxu0 %v99
    %v137 = vpop.f32.mrf.mxu0
    %v138 = vadd.f32 %v118, %v137
    %139 = vdwg.mxu0
    %140 = vst [vmem:[#allocation8] sm:$0xff] %v138
    // Predicated region
    $region34: #{tpu_custom_call.1} parent=1 // pred_check
      _
    $region35: #{tpu_custom_call.1} parent=1 // pred_check_branch
      %142 = sbr.rel (0) target = $region37
    $region36: #{tpu_custom_call.1} parent=1 // pred_region
      %144 = vsyncadd [#allocation4], 0
      %s146 = sshll.u32 [#allocation8], 4
      %s147 = int_to_ptr.vmem [resolvable:$true] %s146
      %s148 = sshll.u32 %s5, 4
      %s149 = int_to_ptr.hbm [resolvable:$true] %s148
      %151 = dma.vmem_to_hbm [thread:$0]  %s147, 128, %s149, [#allocation4]
    $region37: #{tpu_custom_call.1} parent=1 // pred_fallthru
      _
    // Predicated region
    $region38: #{tpu_custom_call.1} parent=1 // pred_check
      _
    $region39: #{tpu_custom_call.1} parent=1 // pred_check_branch
      %153 = sbr.rel (0) target = $region41
    $region40: #{tpu_custom_call.1} parent=1 // pred_region
      %155 = dma.done [#allocation4], 128
    $region41: #{tpu_custom_call.1} parent=1 // pred_fallthru
      _
    %156 = vsyncpa [#allocation3], 1
    %157 = vsyncpa [#allocation6], 1
    %158 = vsyncpa [#allocation4], 1

</llo_original>
